<compile_context>
chip_gen: v7x
topology: tpu7x:2x2x1
jax: 0.10.0
libtpu: 0.0.40
codegen_flags: <defaults>
</compile_context>

<pallas_src>
import functools

import jax
import jax.numpy as jnp
from jax.experimental import pallas as pl
from jax.experimental.pallas import tpu as pltpu

EPS = 1e-5
# (10 -> 16 padded sublanes) * 16384 lanes * 4 B = 1 MiB per VMEM buffer; with
# double-buffered in + out this stays far under scoped-VMEM limits on v5e/v6e/v7x.
DEFAULT_ROW_TILE = 16 * 1024


def _model_kernel(xT_ref, params_ref, gb_ref, o_ref, sum_ref, sq_ref, *,
                  rows, feat, tile, needs_mask):
    p = pl.program_id(0)   # 0 = statistics pass, 1 = normalize/store pass
    j = pl.program_id(1)   # row-tile index

    w = params_ref[:, :feat]                # (F, F)
    bias = params_ref[:, feat:feat + 1]     # (F, 1), broadcasts over lanes

    # Linear (transposed): recomputed in both passes instead of spilling to HBM.
    y = jnp.dot(w, xT_ref[...], preferred_element_type=jnp.float32) + bias

    @pl.when((p == 0) & (j == 0))
    def _init():
        sum_ref[...] = jnp.zeros_like(sum_ref)
        sq_ref[...] = jnp.zeros_like(sq_ref)

    @pl.when(p == 0)
    def _stats():
        if needs_mask:
            # Only needed when rows % tile != 0 (static flag): exclude the
            # out-of-bounds columns of the final partial tile.
            col = j * tile + jax.lax.broadcasted_iota(jnp.int32, y.shape, 1)
            yv = jnp.where(col < rows, y, 0.0)
        else:
            yv = y
        sum_ref[...] += jnp.sum(yv)
        sq_ref[...] += jnp.sum(yv * yv)

    @pl.when(p == 1)
    def _normalize():
        n = float(rows * feat)                          # static true element count
        mu = sum_ref[...] / n                           # (1, 1)
        var = sq_ref[...] / n - mu * mu                 # biased variance (PyTorch BN)
        scale = jax.lax.rsqrt(var + EPS) * gb_ref[0]    # gamma folded
        shift = gb_ref[1] - mu * scale                  # beta & mu folded
        o_ref[...] = jnp.maximum(y * scale + shift, 0.0)


def my_model_forward(x, w, b, gamma, beta, *, row_tile=DEFAULT_ROW_TILE):
    """x: (N, 1, H, 10) float32.  Returns (N, 1, H, 10) float32."""
    N, C, H, F = x.shape
    assert C == 1 and F == 10
    rows = N * C * H

    # Lane-dense transposed layout; no pad (edge tile handled in-kernel).
    xT = x.reshape(rows, F).astype(jnp.float32).T            # (F, rows)

    if rows <= row_tile:
        tile = rows                 # single full-extent block ((8,128) rule waived)
        num_tiles = 1
    else:
        tile = row_tile             # multiple of 128
        num_tiles = pl.cdiv(rows, tile)
    needs_mask = (rows % tile) != 0

    # Coalesce W and b into a single small parameter block (one DMA, reused).
    params = jnp.concatenate(
        [jnp.asarray(w, jnp.float32), jnp.asarray(b, jnp.float32).reshape(F, 1)],
        axis=1)                                               # (F, F+1)
    # gamma/beta as a 2-element SMEM array (scalar reads, no VMEM tile).
    gb = jnp.stack([jnp.asarray(gamma, jnp.float32).reshape(()),
                    jnp.asarray(beta, jnp.float32).reshape(())])   # (2,)

    kernel = functools.partial(_model_kernel, rows=rows, feat=F, tile=tile,
                               needs_mask=needs_mask)

    cost = pl.CostEstimate(
        flops=int(4 * rows * F * F + 10 * rows * F),          # y computed twice
        transcendentals=int(num_tiles),                       # rsqrt per pass-1 tile
        bytes_accessed=int(3 * rows * F * 4 + (F * (F + 1) + 2) * 4),
    )

    outT = pl.pallas_call(
        kernel,
        out_shape=jax.ShapeDtypeStruct((F, rows), jnp.float32),
        grid=(2, num_tiles),
        in_specs=[
            pl.BlockSpec((F, tile), lambda p, j: (0, j)),         # x^T tile (lane-dense)
            pl.BlockSpec((F, F + 1), lambda p, j: (0, 0)),        # packed W|b (fetched once)
            pl.BlockSpec(memory_space=pltpu.MemorySpace.SMEM),    # [gamma, beta]
        ],
        # p*j: pass 0 never writes back; pass 1 writes each block exactly once.
        out_specs=pl.BlockSpec((F, tile), lambda p, j: (0, p * j)),
        scratch_shapes=[pltpu.VMEM((1, 1), jnp.float32),          # running sum
                        pltpu.VMEM((1, 1), jnp.float32)],         # running sum of squares
        compiler_params=pltpu.CompilerParams(
            dimension_semantics=("arbitrary", "arbitrary"),
            vmem_limit_bytes=32 * 1024 * 1024),
        cost_estimate=cost,
    )(xT, params, gb)

    return outT.T.reshape(N, C, H, F)


def _reference(x, w, b, gamma, beta):
    """Pure-JAX reference: Linear -> training-mode BatchNorm2d(1) -> ReLU."""
    y = x @ w.T + b
    mu = jnp.mean(y)
    var = jnp.mean((y - mu) ** 2)
    return jnp.maximum((y - mu) / jnp.sqrt(var + EPS) * gamma[0] + beta[0], 0.0)


if __name__ == "__main__":
    key = jax.random.PRNGKey(0)
    k_x, k_w, k_b, k_x2 = jax.random.split(key, 4)

    # Deterministic parameter init (nn.Linear-style uniform bound 1/sqrt(10)).
    bound = 1.0 / jnp.sqrt(10.0)
    w = jax.random.uniform(k_w, (10, 10), jnp.float32, -bound, bound)
    b = jax.random.uniform(k_b, (10,), jnp.float32, -bound, bound)
    gamma = jnp.ones((1,), jnp.float32)   # BatchNorm2d weight init
    beta = jnp.zeros((1,), jnp.float32)   # BatchNorm2d bias init

    # Input consistent with the module: NCHW with C=1 (BatchNorm2d(1)), last dim 10.
    x = jax.random.normal(k_x, (2, 1, 8, 10), dtype=jnp.float32)
    out = my_model_forward(x, w, b, gamma, beta)
    jax.block_until_ready(out)
    assert jnp.allclose(out, _reference(x, w, b, gamma, beta),
                        atol=1e-5, rtol=1e-5), "mismatch vs reference (single tile)"

    # Exercise the gridded two-pass path with a partial (masked) tail tile:
    # rows = 200, row_tile = 128 -> 2 tiles, tail width 72.
    x2 = jax.random.normal(k_x2, (2, 1, 100, 10), dtype=jnp.float32)
    out2 = my_model_forward(x2, w, b, gamma, beta, row_tile=128)
    jax.block_until_ready(out2)
    assert jnp.allclose(out2, _reference(x2, w, b, gamma, beta),
                        atol=1e-5, rtol=1e-5), "mismatch vs reference (multi tile)"

    print("KERNEL_OK")
</pallas_src>

<mosaic_0001>
module attributes {stable_mosaic.version = 11 : i64} {
  func.func @_model_kernel(%arg0: i32, %arg1: i32, %arg2: memref<10x16xf32, #tpu.memory_space<vmem>>, %arg3: memref<10x11xf32, #tpu.memory_space<vmem>>, %arg4: memref<2xf32, #tpu.memory_space<smem>>, %arg5: memref<10x16xf32, #tpu.memory_space<vmem>>, %arg6: memref<1x1xf32, #tpu.memory_space<vmem>>, %arg7: memref<1x1xf32, #tpu.memory_space<vmem>>) attributes {dimension_semantics = [#tpu.dimension_semantics<arbitrary>, #tpu.dimension_semantics<arbitrary>], iteration_bounds = array<i64: 2, 1>, scalar_prefetch = 0 : i64, scratch_operands = 2 : i64, tpu.core_type = #tpu.core_type<tc>, window_params = [{transform_indices = @transform_0, window_bounds = array<i64: 10, 16>}, {pipeline_mode = #tpu.pipeline_mode<synchronous>, transform_indices = @transform_1, window_bounds = array<i64: 10, 11>}, {transform_indices = @transform_2, window_bounds = array<i64: 2>}, {transform_indices = @transform_3, window_bounds = array<i64: 10, 16>}]} {
    %c0 = arith.constant 0 : index
    %c0_0 = arith.constant 0 : index
    %0 = vector.load %arg3[%c0, %c0_0] : memref<10x11xf32, #tpu.memory_space<vmem>>, vector<10x10xf32>
    %c0_1 = arith.constant 0 : index
    %c10 = arith.constant 10 : index
    %1 = vector.load %arg3[%c0_1, %c10] : memref<10x11xf32, #tpu.memory_space<vmem>>, vector<10x1xf32>
    %c0_2 = arith.constant 0 : index
    %c0_3 = arith.constant 0 : index
    %2 = vector.load %arg2[%c0_2, %c0_3] : memref<10x16xf32, #tpu.memory_space<vmem>>, vector<10x16xf32>
    %cst = arith.constant dense<0.000000e+00> : vector<10x16xf32>
    %3 = tpu.matmul %0, %2, %cst {dimension_numbers = #tpu.dot_dimension_numbers<[1], [0], [0], [1], [0, 0, 1, 1], [], []>} : vector<10x10xf32>, vector<10x16xf32>, vector<10x16xf32> -> vector<10x16xf32>
    %4 = vector.broadcast %1 : vector<10x1xf32> to vector<10x16xf32>
    %5 = arith.addf %3, %4 : vector<10x16xf32>
    %c0_i32 = arith.constant 0 : i32
    %6 = arith.cmpi eq, %arg0, %c0_i32 : i32
    %c0_i32_4 = arith.constant 0 : i32
    %7 = arith.cmpi eq, %arg1, %c0_i32_4 : i32
    %8 = arith.andi %6, %7 : i1
    %9 = arith.extui %8 : i1 to i32
    %c0_i32_5 = arith.constant 0 : i32
    %10 = arith.cmpi ne, %9, %c0_i32_5 : i32
    scf.if %10 {
      %cst_9 = arith.constant 0.000000e+00 : f32
      %17 = vector.broadcast %cst_9 : f32 to vector<1x1xf32>
      %c0_10 = arith.constant 0 : index
      %c0_11 = arith.constant 0 : index
      %18 = vector.load %arg6[%c0_10, %c0_11] : memref<1x1xf32, #tpu.memory_space<vmem>>, vector<1x1xf32>
      tpu.vector_store %arg6[%c0_10, %c0_11], %17 {strides = array<i32>} : memref<1x1xf32, #tpu.memory_space<vmem>>, vector<1x1xf32>,
      %cst_12 = arith.constant 0.000000e+00 : f32
      %19 = vector.broadcast %cst_12 : f32 to vector<1x1xf32>
      %c0_13 = arith.constant 0 : index
      %c0_14 = arith.constant 0 : index
      %20 = vector.load %arg7[%c0_13, %c0_14] : memref<1x1xf32, #tpu.memory_space<vmem>>, vector<1x1xf32>
      tpu.vector_store %arg7[%c0_13, %c0_14], %19 {strides = array<i32>} : memref<1x1xf32, #tpu.memory_space<vmem>>, vector<1x1xf32>,
    } else {
    }
    %c0_i32_6 = arith.constant 0 : i32
    %11 = arith.cmpi eq, %arg0, %c0_i32_6 : i32
    %12 = arith.extui %11 : i1 to i32
    %c0_i32_7 = arith.constant 0 : i32
    %13 = arith.cmpi ne, %12, %c0_i32_7 : i32
    scf.if %13 {
      %c0_9 = arith.constant 0 : index
      %c0_10 = arith.constant 0 : index
      %17 = vector.load %arg6[%c0_9, %c0_10] : memref<1x1xf32, #tpu.memory_space<vmem>>, vector<1x1xf32>
      %18 = vector.shape_cast %5 : vector<10x16xf32> to vector<1x10x16xf32>
      %cst_11 = arith.constant dense<0.000000e+00> : vector<1xf32>
      %19 = vector.multi_reduction <add>, %18, %cst_11 [1, 2] : vector<1x10x16xf32> to vector<1xf32>
      %20 = vector.shape_cast %19 : vector<1xf32> to vector<1x1x1xf32>
      %21 = vector.extract %20[0, 0, 0] : f32 from vector<1x1x1xf32>
      %22 = vector.broadcast %21 : f32 to vector<1x1xf32>
      %23 = arith.addf %17, %22 : vector<1x1xf32>
      %c0_12 = arith.constant 0 : index
      %c0_13 = arith.constant 0 : index
      %24 = vector.load %arg6[%c0_12, %c0_13] : memref<1x1xf32, #tpu.memory_space<vmem>>, vector<1x1xf32>
      tpu.vector_store %arg6[%c0_12, %c0_13], %23 {strides = array<i32>} : memref<1x1xf32, #tpu.memory_space<vmem>>, vector<1x1xf32>,
      %c0_14 = arith.constant 0 : index
      %c0_15 = arith.constant 0 : index
      %25 = vector.load %arg7[%c0_14, %c0_15] : memref<1x1xf32, #tpu.memory_space<vmem>>, vector<1x1xf32>
      %26 = arith.mulf %5, %5 : vector<10x16xf32>
      %27 = vector.shape_cast %26 : vector<10x16xf32> to vector<1x10x16xf32>
      %cst_16 = arith.constant dense<0.000000e+00> : vector<1xf32>
      %28 = vector.multi_reduction <add>, %27, %cst_16 [1, 2] : vector<1x10x16xf32> to vector<1xf32>
      %29 = vector.shape_cast %28 : vector<1xf32> to vector<1x1x1xf32>
      %30 = vector.extract %29[0, 0, 0] : f32 from vector<1x1x1xf32>
      %31 = vector.broadcast %30 : f32 to vector<1x1xf32>
      %32 = arith.addf %25, %31 : vector<1x1xf32>
      %c0_17 = arith.constant 0 : index
      %c0_18 = arith.constant 0 : index
      %33 = vector.load %arg7[%c0_17, %c0_18] : memref<1x1xf32, #tpu.memory_space<vmem>>, vector<1x1xf32>
      tpu.vector_store %arg7[%c0_17, %c0_18], %32 {strides = array<i32>} : memref<1x1xf32, #tpu.memory_space<vmem>>, vector<1x1xf32>,
    } else {
    }
    %c1_i32 = arith.constant 1 : i32
    %14 = arith.cmpi eq, %arg0, %c1_i32 : i32
    %15 = arith.extui %14 : i1 to i32
    %c0_i32_8 = arith.constant 0 : i32
    %16 = arith.cmpi ne, %15, %c0_i32_8 : i32
    scf.if %16 {
      %c0_9 = arith.constant 0 : index
      %c0_10 = arith.constant 0 : index
      %17 = vector.load %arg6[%c0_9, %c0_10] : memref<1x1xf32, #tpu.memory_space<vmem>>, vector<1x1xf32>
      %cst_11 = arith.constant 1.600000e+02 : f32
      %18 = vector.broadcast %cst_11 : f32 to vector<1x1xf32>
      %19 = arith.divf %17, %18 : vector<1x1xf32>
      %c0_12 = arith.constant 0 : index
      %c0_13 = arith.constant 0 : index
      %20 = vector.load %arg7[%c0_12, %c0_13] : memref<1x1xf32, #tpu.memory_space<vmem>>, vector<1x1xf32>
      %cst_14 = arith.constant 1.600000e+02 : f32
      %21 = vector.broadcast %cst_14 : f32 to vector<1x1xf32>
      %22 = arith.divf %20, %21 : vector<1x1xf32>
      %23 = arith.mulf %19, %19 : vector<1x1xf32>
      %24 = arith.subf %22, %23 : vector<1x1xf32>
      %cst_15 = arith.constant 9.99999974E-6 : f32
      %25 = vector.broadcast %cst_15 : f32 to vector<1x1xf32>
      %26 = arith.addf %24, %25 : vector<1x1xf32>
      %27 = math.rsqrt %26 : vector<1x1xf32>
      %c0_16 = arith.constant 0 : index
      %28 = memref.load %arg4[%c0_16] : memref<2xf32, #tpu.memory_space<smem>>
      %29 = vector.broadcast %28 : f32 to vector<1x1xf32>
      %30 = arith.mulf %27, %29 : vector<1x1xf32>
      %c1 = arith.constant 1 : index
      %31 = memref.load %arg4[%c1] : memref<2xf32, #tpu.memory_space<smem>>
      %32 = arith.mulf %19, %30 : vector<1x1xf32>
      %33 = vector.broadcast %31 : f32 to vector<1x1xf32>
      %34 = arith.subf %33, %32 : vector<1x1xf32>
      %35 = vector.broadcast %30 : vector<1x1xf32> to vector<10x16xf32>
      %36 = arith.mulf %5, %35 : vector<10x16xf32>
      %37 = vector.broadcast %34 : vector<1x1xf32> to vector<10x16xf32>
      %38 = arith.addf %36, %37 : vector<10x16xf32>
      %cst_17 = arith.constant 0.000000e+00 : f32
      %39 = vector.broadcast %cst_17 : f32 to vector<10x16xf32>
      %40 = arith.maximumf %38, %39 : vector<10x16xf32>
      %c0_18 = arith.constant 0 : index
      %c0_19 = arith.constant 0 : index
      %41 = vector.load %arg5[%c0_18, %c0_19] : memref<10x16xf32, #tpu.memory_space<vmem>>, vector<10x16xf32>
      tpu.vector_store %arg5[%c0_18, %c0_19], %40 {strides = array<i32>} : memref<10x16xf32, #tpu.memory_space<vmem>>, vector<10x16xf32>,
    } else {
    }
    return
  }
  func.func @transform_0(%arg0: i32, %arg1: i32) -> (i32, i32) {
    %c0_i32 = arith.constant 0 : i32
    %c0_i32_0 = arith.constant 0 : i32
    return %c0_i32, %arg1 : i32, i32
  }
  func.func @transform_1(%arg0: i32, %arg1: i32) -> (i32, i32) {
    %c0_i32 = arith.constant 0 : i32
    %c0_i32_0 = arith.constant 0 : i32
    %c0_i32_1 = arith.constant 0 : i32
    return %c0_i32, %c0_i32_0 : i32, i32
  }
  func.func @transform_2(%arg0: i32, %arg1: i32) -> i32 {
    %c0_i32 = arith.constant 0 : i32
    %c0_i32_0 = arith.constant 0 : i32
    return %c0_i32 : i32
  }
  func.func @transform_3(%arg0: i32, %arg1: i32) -> (i32, i32) {
    %0 = arith.muli %arg0, %arg1 : i32
    %c0_i32 = arith.constant 0 : i32
    %c0_i32_0 = arith.constant 0 : i32
    return %c0_i32, %0 : i32, i32
  }
}

</mosaic_0001>

<llo_original>
// kernel: tpu_custom_call.1
$region0: #{tpu_custom_call.1}
  #allocation0 [shape = 'u32[]', space=smem, size = 0x4, offset = 0x4, fixed_abs, tag = 'smem constant byte address 0x4 - core index']
  #allocation1 [shape = 'u32[144,128]{1,0:T(1,128)}', space=vmem, size = 0x12000, scoped, tag = 'internal scratch']
  #allocation2 [shape = 'f32[1,1]{1,0:T(1,128)}', space=vmem, size = 0x200, scoped, tag = 'scratch operand']
  #allocation3 [shape = 'f32[1,1]{1,0:T(1,128)}', space=vmem, size = 0x200, scoped, tag = 'scratch operand']
  %s0 = inlined_call_operand.hbm [shape: f32[10,16], index: 0, kind: input, shape index: {}]
  %s1 = inlined_call_operand.hbm [shape: f32[10,11], index: 1, kind: input, shape index: {}]
  %s2 = inlined_call_operand.vmem [shape: f32[2], index: 2, kind: input, shape index: {}]
  %s3 = inlined_call_operand.hbm [shape: f32[10,16], index: 3, kind: output, shape index: {}]
  %s4 = sld [smem:[#allocation0]]
  $region69: #{tpu_custom_call.1} parent=0
    _
  %s6 = ssub.s32 1, %s4
  %s7 = scalar_select 0, %s6, %s4
  $region1: #{tpu_custom_call.1} parent=0
    #allocation4 [shape = 'u8[8192]{0}', space=vmem, size = 0x2000, scoped, tag = 'input window, operand 0, single buffered']
    #allocation5 [shape = 's32[2]{0}', space=sflag, size = 0x8, scoped, tag = 'scoped memory for tpu_custom_call.1']
    #allocation6 [shape = 's32[2]{0}', space=sflag, size = 0x8, scoped, tag = 'scoped memory for tpu_custom_call.1']
    #allocation7 [shape = 's32[2]{0}', space=sflag, size = 0x8, scoped, tag = 'scoped memory for tpu_custom_call.1']
    #allocation8 [shape = 'u8[8192]{0}', space=vmem, size = 0x2000, scoped, tag = 'input window, operand 1, single buffered']
    #allocation9 [shape = 's32[1]{0}', space=sflag, size = 0x4, scoped, tag = 'scoped memory for tpu_custom_call.1']
    #allocation10 [shape = 'u8[512]{0}', space=smem, size = 0x200, scoped, tag = 'input window, operand 2, single buffered']
    #allocation11 [shape = 'u8[16384]{0}', space=vmem, size = 0x4000, scoped, tag = 'output window, operand 0']
    %8 = vsyncpa [#allocation5], 0
    %9 = vsyncpa [#allocation9], 0
    %10 = vsyncpa [#allocation7], 0
    %11 = vsyncpa [#allocation6], 0
    %s12 = scalar_lea.sflag [#allocation6], 1
    %13 = vsyncpa %s12, 0
    loop: start=0, step=1, limit=4
    $region2: #{tpu_custom_call.1} parent=1 // loop_pre_header
      _
    $region3: #{tpu_custom_call.1} parent=1 // loop_header
      %s15 = sphi 0, %s19
      %p16 = scmp.ge.s32.totalorder %s15, 4
      %s22 = sphi 0, %s34
      %s23 = sphi 0, %s30
      %s24 = sphi 0, %s22
      %s25 = sphi 0, %s23
      %s26 = sphi 0, %s24
      %s27 = sphi 0, %s25
      %s37 = sphi 0, %s39
      %s40 = sphi 0, %s37
      %s41 = sphi 0, %s40
      %s57 = sphi 0, %s41
      %s61 = sphi 0, %s61
      %s63 = sphi 0, %s61
      %s64 = sphi 0, %s63
      %s78 = sphi 0, %s64
      %s82 = sphi 0, %s82
      %s84 = sphi 0, %s82
      %s85 = sphi 0, %s84
      %s99 = sphi 0, %s85
      %s107 = sphi 0, %s109
      %s110 = sphi 0, %s107
      %s111 = sphi 0, %s110
      %s127 = sphi 0, %s111
    $region4: #{tpu_custom_call.1} parent=1 // loop_header_branch
      %18 = sbr.rel (%p16) target = $region8
    $region5: #{tpu_custom_call.1} parent=1 // loop_body
      %s20 = ssub.s32 %s15, 1
      %s21 = ssub.s32 %s15, 2
      %s28 = sadd.s32 1, %s23
      %p29 = scmp.ge.s32.totalorder %s28, 1
      %s30 = scalar_select %p29, 0, %s28
      %s31 = sadd.s32 1, %s22
      %s32 = scalar_select %p29, %s31, %s22
      %p33 = scmp.ge.s32.totalorder %s32, 2
      %s34 = scalar_select %p33, 0, %s32
      %s35 = ssub.s32 %s23, %s30
      %p36 = scmp.eq.s32.totalorder %s35, 0
      %s38 = sadd.s32 %s37, 1
      %s39 = scalar_select %p36, %s37, %s38
      %p42 = pneg %p36
      %p43 = scmp.eq.s32.totalorder %s15, 1
      %p44 = por %p42, %p43
      %p45 = scmp.ne.s32.totalorder %s37, %s40
      %p46 = scmp.eq.s32.totalorder %s15, 0
      %p47 = por %p45, %p46
      %p48 = scmp.ne.s32.totalorder %s37, %s40
      %p49 = scmp.eq.s32.totalorder %s20, 1
      %p50 = por %p48, %p49
      %p51 = scmp.ne.s32.totalorder %s40, %s41
      %p52 = scmp.eq.s32.totalorder %s20, 0
      %p53 = por %p51, %p52
      %p54 = scmp.ne.s32.totalorder %s40, %s41
      %p55 = scmp.eq.s32.totalorder %s21, 1
      %p56 = por %p54, %p55
      %p58 = scmp.ne.s32.totalorder %s41, %s57
      %p59 = scmp.eq.s32.totalorder %s21, 0
      %p60 = por %p58, %p59
      %s62 = sadd.s32 %s61, 1
      %p65 = scmp.eq.s32.totalorder %s15, 1
      %p66 = scmp.ne.s32.totalorder %s61, %s63
      %p67 = scmp.eq.s32.totalorder %s15, 0
      %p68 = por %p66, %p67
      %p69 = scmp.ne.s32.totalorder %s61, %s63
      %p70 = scmp.eq.s32.totalorder %s20, 1
      %p71 = por %p69, %p70
      %p72 = scmp.ne.s32.totalorder %s63, %s64
      %p73 = scmp.eq.s32.totalorder %s20, 0
      %p74 = por %p72, %p73
      %p75 = scmp.ne.s32.totalorder %s63, %s64
      %p76 = scmp.eq.s32.totalorder %s21, 1
      %p77 = por %p75, %p76
      %p79 = scmp.ne.s32.totalorder %s64, %s78
      %p80 = scmp.eq.s32.totalorder %s21, 0
      %p81 = por %p79, %p80
      %s83 = sadd.s32 %s82, 1
      %p86 = scmp.eq.s32.totalorder %s15, 1
      %p87 = scmp.ne.s32.totalorder %s82, %s84
      %p88 = scmp.eq.s32.totalorder %s15, 0
      %p89 = por %p87, %p88
      %p90 = scmp.ne.s32.totalorder %s82, %s84
      %p91 = scmp.eq.s32.totalorder %s20, 1
      %p92 = por %p90, %p91
      %p93 = scmp.ne.s32.totalorder %s84, %s85
      %p94 = scmp.eq.s32.totalorder %s20, 0
      %p95 = por %p93, %p94
      %p96 = scmp.ne.s32.totalorder %s84, %s85
      %p97 = scmp.eq.s32.totalorder %s21, 1
      %p98 = por %p96, %p97
      %p100 = scmp.ne.s32.totalorder %s85, %s99
      %p101 = scmp.eq.s32.totalorder %s21, 0
      %p102 = por %p100, %p101
      %s103 = smul.u32 %s22, %s23
      %s104 = smul.u32 %s34, %s30
      %s105 = ssub.s32 %s103, %s104
      %p106 = scmp.eq.s32.totalorder %s105, 0
      %s108 = sadd.s32 %s107, 1
      %s109 = scalar_select %p106, %s107, %s108
      %p112 = pneg %p106
      %p113 = scmp.eq.s32.totalorder %s15, 1
      %p114 = por %p112, %p113
      %p115 = scmp.ne.s32.totalorder %s107, %s110
      %p116 = scmp.eq.s32.totalorder %s15, 0
      %p117 = por %p115, %p116
      %p118 = scmp.ne.s32.totalorder %s107, %s110
      %p119 = scmp.eq.s32.totalorder %s20, 1
      %p120 = por %p118, %p119
      %p121 = scmp.ne.s32.totalorder %s110, %s111
      %p122 = scmp.eq.s32.totalorder %s20, 0
      %p123 = por %p121, %p122
      %p124 = scmp.ne.s32.totalorder %s110, %s111
      %p125 = scmp.eq.s32.totalorder %s21, 1
      %p126 = por %p124, %p125
      %p128 = scmp.ne.s32.totalorder %s111, %s127
      %p129 = scmp.eq.s32.totalorder %s21, 0
      %p130 = por %p128, %p129
      %p131 = scmp.le.s32.totalorder 1, %s15
      %p132 = scmp.lt.s32.totalorder %s15, 3
      %p133 = pnand %p131, %p132
      %p134 = pneg %p133
      // Predicated region
      $region9: #{tpu_custom_call.1} parent=5 // pred_check
        _
      $region10: #{tpu_custom_call.1} parent=5 // pred_check_branch
        %136 = sbr.rel (%p133) target = $region12
      $region11: #{tpu_custom_call.1} parent=5 // pred_region
        %s137 = ssub.s32 %s15, 1
        // Predicated region
        $region13: #{tpu_custom_call.1} parent=11 // pred_check
          %p138 = pneg %p53
        $region14: #{tpu_custom_call.1} parent=11 // pred_check_branch
          %140 = sbr.rel (%p138) target = $region16
        $region15: #{tpu_custom_call.1} parent=11 // pred_region
          %s142 = ssub.s32 256, 256
          %143 = vsyncadd [#allocation5], %s142
          %s144 = smul.addr %s25, 128
          %s145 = scalar_lea.hbm %s0, %s144
          %s146 = sshll.u32 [#allocation4], 4
          %s147 = int_to_ptr.vmem [resolvable:$true] %s146
          %152 = dma.hbm_to_vmem [thread:$0]  %s145, 256, %s147, [#allocation5], 128, 128, 8
        $region16: #{tpu_custom_call.1} parent=11 // pred_fallthru
          _
        // Predicated region
        $region17: #{tpu_custom_call.1} parent=11 // pred_check
          %p153 = pneg %p74
        $region18: #{tpu_custom_call.1} parent=11 // pred_check_branch
          %155 = sbr.rel (%p153) target = $region20
        $region19: #{tpu_custom_call.1} parent=11 // pred_region
          %s157 = ssub.s32 256, 256
          %158 = vsyncadd [#allocation9], %s157
          %s159 = sshll.u32 [#allocation8], 4
          %s160 = int_to_ptr.vmem [resolvable:$true] %s159
          %165 = dma.hbm_to_vmem [thread:$0]  %s1, 256, %s160, [#allocation9], 128, 128, 8
        $region20: #{tpu_custom_call.1} parent=11 // pred_fallthru
          _
        // Predicated region
        $region21: #{tpu_custom_call.1} parent=11 // pred_check
          %p166 = pneg %p95
        $region22: #{tpu_custom_call.1} parent=11 // pred_check_branch
          %168 = sbr.rel (%p166) target = $region24
        $region23: #{tpu_custom_call.1} parent=11 // pred_region
          %s170 = ssub.s32 16, 16
          %171 = vsyncadd [#allocation7], %s170
          %s173 = sshll.u32 %s2, 4
          %s174 = int_to_ptr.vmem [resolvable:$true] %s173
          %176 = dma.vmem_to_smem %s174, 16, [#allocation10], [#allocation7]
        $region24: #{tpu_custom_call.1} parent=11 // pred_fallthru
          _
      $region12: #{tpu_custom_call.1} parent=5 // pred_fallthru
        _
      %p177 = scmp.lt.s32.totalorder %s15, 2
      // Predicated region
      $region25: #{tpu_custom_call.1} parent=5 // pred_check
        %p178 = pneg %p177
      $region26: #{tpu_custom_call.1} parent=5 // pred_check_branch
        %180 = sbr.rel (%p178) target = $region28
      $region27: #{tpu_custom_call.1} parent=5 // pred_region
        _
      $region28: #{tpu_custom_call.1} parent=5 // pred_fallthru
        _
      %p181 = scmp.le.s32.totalorder 1, %s15
      %p182 = scmp.lt.s32.totalorder %s15, 3
      %p183 = pnand %p181, %p182
      %p184 = pneg %p183
      // Predicated region
      $region29: #{tpu_custom_call.1} parent=5 // pred_check
        _
      $region30: #{tpu_custom_call.1} parent=5 // pred_check_branch
        %186 = sbr.rel (%p183) target = $region32
      $region31: #{tpu_custom_call.1} parent=5 // pred_region
        %s187 = ssub.s32 %s15, 1
        // Predicated region
        $region33: #{tpu_custom_call.1} parent=31 // pred_check
          %p188 = pneg %p53
        $region34: #{tpu_custom_call.1} parent=31 // pred_check_branch
          %190 = sbr.rel (%p188) target = $region36
        $region35: #{tpu_custom_call.1} parent=31 // pred_region
          %191 = dma.done [#allocation5], 256
        $region36: #{tpu_custom_call.1} parent=31 // pred_fallthru
          _
        // Predicated region
        $region37: #{tpu_custom_call.1} parent=31 // pred_check
          %p192 = pneg %p74
        $region38: #{tpu_custom_call.1} parent=31 // pred_check_branch
          %194 = sbr.rel (%p192) target = $region40
        $region39: #{tpu_custom_call.1} parent=31 // pred_region
          %195 = dma.done [#allocation9], 256
        $region40: #{tpu_custom_call.1} parent=31 // pred_fallthru
          _
        // Predicated region
        $region41: #{tpu_custom_call.1} parent=31 // pred_check
          %p196 = pneg %p95
        $region42: #{tpu_custom_call.1} parent=31 // pred_check_branch
          %198 = sbr.rel (%p196) target = $region44
        $region43: #{tpu_custom_call.1} parent=31 // pred_region
          %199 = dma.done [#allocation7], 16
        $region44: #{tpu_custom_call.1} parent=31 // pred_fallthru
          _
        %200 = sfence
        %p201 = pneg %p53
        %p202 = pneg %p50
        %p203 = pneg %p74
        %p204 = pneg %p71
        %p205 = pneg %p95
        %p206 = pneg %p92
        %p207 = pneg %p123
        %p208 = pneg %p120
        %s209 = sand.u32 %s110, 1
        %s210 = scalar_lea.sflag [#allocation6], %s209
        %s211 = sand.u32 %s110, 1
        %s212 = smul.addr %s211, 16
        %s213 = scalar_lea.vmem [#allocation11], %s212
        %s214 = smul.u32 %s24, %s25
        %v215 = vld [vmem:[#allocation8] sm:$0xff]
        %v216 = vld [vmem:[#allocation8 + $0x8] sm:$0x3]
        %v217 = vld [vmem:[#allocation4] sm:$0xff]
        %v218 = vld [vmem:[#allocation4 + $0x8] sm:$0x3]
        %220 = vset.pattern.permute.xlu0 10
        %221 = vperm.xlu0 %220, %v215
        %v222 = vpop.permute.xlu0 %221
        %225 = vset.pattern.permute.xlu0 10
        %226 = vperm.xlu0 %225, %v216
        %v227 = vpop.permute.xlu0 %226
        %vm229 = vcmask 80896
        %v230 = vsel %vm229, %v215, 0
        %v232 = vsel %vm229, %v216, 0
        %vm234 = vcmask 1041408
        %v236 = vsel %vm234, %v218, 0
        %238 = vmatprep.subr.mxu0 0.0
        %239 = vmatpush1.msra.mxu0 %v217
        %240 = vmatprep.subr.mxu0 0.0
        %241 = vmatpush1.msra.mxu0 %v236
        %242 = vmatprep.subr.mxu0 0.0
        %243 = vmatpush1.msra.mxu0 0.0
        %244 = vmatprep.subr.mxu0 0.0
        %245 = vmatpush1.msra.mxu0 0.0
        %246 = vmatprep.subr.mxu0 0.0
        %247 = vmatpush1.msra.mxu0 0.0
        %248 = vmatprep.subr.mxu0 0.0
        %249 = vmatpush1.msra.mxu0 0.0
        %250 = vmatprep.subr.mxu0 0.0
        %251 = vmatpush1.msra.mxu0 0.0
        %252 = vmatprep.subr.mxu0 0.0
        %253 = vmatpush1.msra.mxu0 0.0
        %254 = vmatprep.subr.mxu0 0.0
        %255 = vmatpush1.msra.mxu0 0.0
        %256 = vmatprep.subr.mxu0 0.0
        %257 = vmatpush1.msra.mxu0 0.0
        %258 = vmatprep.subr.mxu0 0.0
        %259 = vmatpush1.msra.mxu0 0.0
        %260 = vmatprep.subr.mxu0 0.0
        %261 = vmatpush1.msra.mxu0 0.0
        %262 = vmatprep.subr.mxu0 0.0
        %263 = vmatpush1.msra.mxu0 0.0
        %264 = vmatprep.subr.mxu0 0.0
        %265 = vmatpush1.msra.mxu0 0.0
        %266 = vmatprep.subr.mxu0 0.0
        %267 = vmatpush1.msra.mxu0 0.0
        %268 = vmatprep.subr.mxu0 0.0
        %269 = vmatpush1.msra.mxu0 0.0
        %270 = vmatprep.subr.mxu0 0.0
        %271 = vmatpush1.msra.mxu0 0.0
        %272 = vmatprep.subr.mxu0 0.0
        %273 = vmatpush1.msra.mxu0 0.0
        %274 = vmatprep.subr.mxu0 0.0
        %275 = vmatpush1.msra.mxu0 0.0
        %276 = vmatprep.subr.mxu0 0.0
        %277 = vmatpush1.msra.mxu0 0.0
        %278 = vmatprep.subr.mxu0 0.0
        %279 = vmatpush1.msra.mxu0 0.0
        %280 = vmatprep.subr.mxu0 0.0
        %281 = vmatpush1.msra.mxu0 0.0
        %282 = vmatprep.subr.mxu0 0.0
        %283 = vmatpush1.msra.mxu0 0.0
        %284 = vmatprep.subr.mxu0 0.0
        %285 = vmatpush1.msra.mxu0 0.0
        %286 = vmatprep.subr.mxu0 0.0
        %287 = vmatpush1.msra.mxu0 0.0
        %288 = vmatprep.subr.mxu0 0.0
        %289 = vmatpush1.msra.mxu0 0.0
        %290 = vmatprep.subr.mxu0 0.0
        %291 = vmatpush1.msra.mxu0 0.0
        %292 = vmatprep.subr.mxu0 0.0
        %293 = vmatpush1.msra.mxu0 0.0
        %294 = vmatprep.subr.mxu0 0.0
        %295 = vmatpush1.msra.mxu0 0.0
        %296 = vmatprep.subr.mxu0 0.0
        %297 = vmatpush1.msra.mxu0 0.0
        %298 = vmatprep.subr.mxu0 0.0
        %299 = vmatpush1.msra.mxu0 0.0
        %300 = vmatprep.subr.mxu0 0.0
        %301 = vmatpush1.msra.mxu0 0.0
        %302 = vmatprep.mubr.f32.mxu0 0.0
        %303 = vmatmul.mubr.f32.gmra.mrb[0].mxu0 %v230
        %v304 = vpop.f32.mrb[0].mxu0
        %v305 = vadd.f32 %v222, %v304
        %v306 = vpop.f32.mrb[0].mxu0
        %307 = vmatprep.mubr.f32.mxu0 0.0
        %308 = vmatmul.mubr.f32.gmra.mrb[0].mxu0 %v232
        %v309 = vpop.f32.mrb[0].mxu0
        %v310 = vadd.f32 %v227, %v309
        %v311 = vpop.f32.mrb[0].mxu0
        %312 = vdwg.mxu0
        %p313 = scmp.eq.s32.totalorder %s24, 0
        %p314 = scmp.eq.s32.totalorder %s25, 0
        %p315 = pnand %p313, %p314
        %p316 = pneg %p315
        // Predicated region
        $region45: #{tpu_custom_call.1} parent=31 // pred_check
          _
        $region46: #{tpu_custom_call.1} parent=31 // pred_check_branch
          %318 = sbr.rel (%p315) target = $region48
        $region47: #{tpu_custom_call.1} parent=31 // pred_region
          %vm319 = vcmask 0
          %320 = vst.msk [vmem:[#allocation2] sm:$0x1] %vm319, 0.0
          %321 = vst.msk [vmem:[#allocation3] sm:$0x1] %vm319, 0.0
        $region48: #{tpu_custom_call.1} parent=31 // pred_fallthru
          _
        // Predicated region
        $region49: #{tpu_custom_call.1} parent=31 // pred_check
          %p322 = pneg %p313
        $region50: #{tpu_custom_call.1} parent=31 // pred_check_branch
          %324 = sbr.rel (%p322) target = $region52
        $region51: #{tpu_custom_call.1} parent=31 // pred_region
          %v325 = vld [vmem:[#allocation2] sm:$0x1]
          %vm326 = vcmask 130048
          %v327 = vsel %vm326, %v305, 0.0
          %vm328 = vcmask 123904
          %v329 = vsel %vm328, %v310, 0.0
          %v330 = vadd.f32 %v327, %v329
          %331 = vadd.xlane.f32.xlu0 %v330
          %v332 = vpop.xlane.xlu0 %331
          %v333 = vrot.slane %v332, 4
          %v334 = vadd.f32 %v332, %v333
          %v335 = vrot.slane %v334, 2
          %v336 = vadd.f32 %v334, %v335
          %v337 = vrot.slane %v336, 1
          %v338 = vadd.f32 %v336, %v337
          %s339 = vtos %v338
          %v340 = vstv %s339
          %v341 = vadd.f32 %v325, %v340
          %vm342 = vcmask 0
          %343 = vst.msk [vmem:[#allocation2] sm:$0x1] %vm342, %v341
          %v344 = vld [vmem:[#allocation3] sm:$0x1]
          %v345 = vmul.f32 %v305, %v305
          %v346 = vmul.f32 %v310, %v310
          %v347 = vsel %vm326, %v345, 0.0
          %v348 = vsel %vm328, %v346, 0.0
          %v349 = vadd.f32 %v347, %v348
          %350 = vadd.xlane.f32.xlu0 %v349
          %v351 = vpop.xlane.xlu0 %350
          %v352 = vrot.slane %v351, 4
          %v353 = vadd.f32 %v351, %v352
          %v354 = vrot.slane %v353, 2
          %v355 = vadd.f32 %v353, %v354
          %v356 = vrot.slane %v355, 1
          %v357 = vadd.f32 %v355, %v356
          %s358 = vtos %v357
          %v359 = vstv %s358
          %v360 = vadd.f32 %v344, %v359
          %361 = vst.msk [vmem:[#allocation3] sm:$0x1] %vm342, %v360
        $region52: #{tpu_custom_call.1} parent=31 // pred_fallthru
          _
        %p362 = scmp.eq.s32.totalorder %s24, 1
        // Predicated region
        $region53: #{tpu_custom_call.1} parent=31 // pred_check
          %p363 = pneg %p362
        $region54: #{tpu_custom_call.1} parent=31 // pred_check_branch
          %365 = sbr.rel (%p363) target = $region56
        $region55: #{tpu_custom_call.1} parent=31 // pred_region
          %v366 = vld [vmem:[#allocation2] sm:$0x1]
          %v367 = vrcp.pop 160.0
          %v368 = vmul.f32 %v366, %v367
          %v369 = vld [vmem:[#allocation3] sm:$0x1]
          %v370 = vmul.f32 %v369, %v367
          %v371 = vmul.f32 %v368, %v368
          %v372 = vsub.f32 %v370, %v371
          %v373 = vadd.f32 %v372, 1e-05
          %v374 = vrsqrt.pop %v373
          %s375 = sld [smem:[#allocation10]]
          %v376 = vstv %s375
          %v377 = vmul.f32 %v374, %v376
          %s378 = sld [smem:[#allocation10 + $0x1]]
          %v379 = vmul.f32 %v368, %v377
          %v380 = vstv %s378
          %v381 = vsub.f32 %v380, %v379
          %v383 = vlaneseq
          %v384 = vshrl.u32 %v383, 7
          %v385 = vsub.s32 0, %v384
          %v386 = vrot.slane %v377, %v385
          %387 = vset.pattern.permute.xlu0 0
          %388 = vperm.xlu0 %387, %v386
          %v389 = vpop.permute.xlu0 %388
          %v391 = vmul.f32 %v305, %v389
          %v392 = vmul.f32 %v310, %v389
          %v394 = vlaneseq
          %v395 = vshrl.u32 %v394, 7
          %v396 = vsub.s32 0, %v395
          %v397 = vrot.slane %v381, %v396
          %398 = vset.pattern.permute.xlu0 0
          %399 = vperm.xlu0 %398, %v397
          %v400 = vpop.permute.xlu0 %399
          %v402 = vadd.f32 %v391, %v400
          %v403 = vadd.f32 %v392, %v400
          %v404 = vmax.f32 %v402, 0.0
          %v405 = vmax.f32 %v403, 0.0
          %vm406 = vcmask 130048
          %407 = vst.msk [vmem:[%s213] sm:$0xff] %vm406, %v404
          %vm408 = vcmask 123904
          %409 = vst.msk [vmem:[%s213 + $0x8] sm:$0x3] %vm408, %v405
        $region56: #{tpu_custom_call.1} parent=31 // pred_fallthru
          _
        %s410 = sand.u32 %s110, 1
        %s411 = scalar_lea.sflag [#allocation6], %s410
        %s412 = sand.u32 %s110, 1
        %s413 = smul.addr %s412, 16
        %s414 = scalar_lea.vmem [#allocation11], %s413
        // Predicated region
        $region57: #{tpu_custom_call.1} parent=31 // pred_check
          %p415 = pneg %p120
        $region58: #{tpu_custom_call.1} parent=31 // pred_check_branch
          %417 = sbr.rel (%p415) target = $region60
        $region59: #{tpu_custom_call.1} parent=31 // pred_region
          %s418 = smul.u32 %s24, %s25
          %s420 = ssub.s32 256, 256
          %421 = vsyncadd %s411, %s420
          %s422 = smul.addr %s418, 128
          %s423 = scalar_lea.hbm %s3, %s422
          %s424 = sshll.u32 %s414, 4
          %s425 = int_to_ptr.vmem [resolvable:$true] %s424
          %430 = dma.vmem_to_hbm [thread:$0]  %s425, 256, %s423, %s411, 128, 128, 8
        $region60: #{tpu_custom_call.1} parent=31 // pred_fallthru
          _
      $region32: #{tpu_custom_call.1} parent=5 // pred_fallthru
        _
      %p431 = scmp.le.s32.totalorder 2, %s15
      // Predicated region
      $region61: #{tpu_custom_call.1} parent=5 // pred_check
        %p432 = pneg %p431
      $region62: #{tpu_custom_call.1} parent=5 // pred_check_branch
        %434 = sbr.rel (%p432) target = $region64
      $region63: #{tpu_custom_call.1} parent=5 // pred_region
        %s435 = ssub.s32 %s15, 2
        // Predicated region
        $region65: #{tpu_custom_call.1} parent=63 // pred_check
          %p436 = pneg %p126
        $region66: #{tpu_custom_call.1} parent=63 // pred_check_branch
          %438 = sbr.rel (%p436) target = $region68
        $region67: #{tpu_custom_call.1} parent=63 // pred_region
          %s439 = sand.u32 %s111, 1
          %s440 = scalar_lea.sflag [#allocation6], %s439
          %s441 = sand.u32 %s111, 1
          %s442 = smul.addr %s441, 16
          %s443 = scalar_lea.vmem [#allocation11], %s442
          %444 = dma.done %s440, 256
        $region68: #{tpu_custom_call.1} parent=63 // pred_fallthru
          _
      $region64: #{tpu_custom_call.1} parent=5 // pred_fallthru
        _
    $region6: #{tpu_custom_call.1} parent=1 // loop_footer
      %s19 = sadd.s32 1, %s15
    $region7: #{tpu_custom_call.1} parent=1 // loop_footer_branch
      %14 = sbr.rel target = $region3
    $region8: #{tpu_custom_call.1} parent=1 // loop_exit
      _
    %445 = vsyncpa [#allocation5], 1
    %s446 = scalar_lea.sflag [#allocation5], 1
    %447 = vsyncpa %s446, 1
    %448 = vsyncpa [#allocation9], 1
    %449 = vsyncpa [#allocation6], 1
    %s450 = scalar_lea.sflag [#allocation6], 1
    %451 = vsyncpa %s450, 1
    %452 = vsyncpa [#allocation7], 1
    %s453 = scalar_lea.sflag [#allocation7], 1
    %454 = vsyncpa %s453, 1

</llo_original>
